<compile_context>
chip_gen: v5e
topology: v5e:2x2
jax: 0.10.0
libtpu: 0.0.40
codegen_flags: <defaults>
</compile_context>

<pallas_src>
import functools

import jax
import jax.numpy as jnp
from jax import lax
from jax.experimental import pallas as pl
from jax.experimental.pallas import tpu as pltpu

LANE = 128
TM_DEFAULT = 2048  # rows per block -> 2048*128*4B = 1 MiB per f32 input block


# ----------------------------------------------------------------------------
# kernels
# ----------------------------------------------------------------------------
def _smooth_l1(p_ref, t_ref, w_ref, beta):
    p = p_ref[...].astype(jnp.float32)
    t = t_ref[...].astype(jnp.float32)
    diff = jnp.abs(p - t)
    loss = jnp.where(diff < beta, diff * diff * (0.5 / beta), diff - 0.5 * beta)
    if w_ref is not None:
        loss = loss * w_ref[...].astype(jnp.float32)
    return loss


def _smooth_l1_sum_kernel(*refs, beta, rows, tm, has_weight):
    """One (tm, 128) tile -> (1, 128) lane-wise partial sum for this block."""
    if has_weight:
        p_ref, t_ref, w_ref, psum_ref = refs
    else:
        p_ref, t_ref, psum_ref = refs
        w_ref = None

    loss = _smooth_l1(p_ref, t_ref, w_ref, beta)

    if rows % tm != 0:
        # Ragged tail block: rows beyond the array hold unspecified data; zero
        # them before reducing.
        row_in_blk = lax.broadcasted_iota(jnp.int32, (tm, LANE), 0)
        global_row = pl.program_id(0) * tm + row_in_blk
        loss = jnp.where(global_row < rows, loss, 0.0)

    # 255 VPU vreg-adds + one cross-sublane reduce; lane-dense (1,128) store.
    psum_ref[...] = jnp.sum(loss, axis=0, keepdims=True)


def _smooth_l1_elem_kernel(*refs, beta, has_weight):
    """One (tm, 128) tile of elementwise loss (reduction='none')."""
    if has_weight:
        p_ref, t_ref, w_ref, loss_ref = refs
    else:
        p_ref, t_ref, loss_ref = refs
        w_ref = None
    loss = _smooth_l1(p_ref, t_ref, w_ref, beta)
    loss_ref[...] = loss.astype(loss_ref.dtype)


# ----------------------------------------------------------------------------
# wrappers
# ----------------------------------------------------------------------------
def _prep(pred, target, weight):
    """Flatten to a lane-dense (rows, 128) slab (minimal pad to 128 lanes)."""
    numel = pred.size
    assert pred.shape == target.shape and numel > 0
    p = pred.reshape(-1)
    t = target.reshape(-1)
    w = None
    if weight is not None:
        assert weight.size == numel, "weight must have the same numel as pred"
        w = weight.reshape(-1)

    pad = (-numel) % LANE
    if pad:
        # Minimal pad only (<=127 elems); padded entries give loss==0.
        # TODO(synk): for very large non-128-multiple inputs, a masked tail
        # lane inside the kernel would avoid this whole-array copy.
        p = jnp.pad(p, (0, pad))
        t = jnp.pad(t, (0, pad))
        if w is not None:
            w = jnp.pad(w, (0, pad))

    rows = p.shape[0] // LANE
    p2 = p.reshape(rows, LANE)
    t2 = t.reshape(rows, LANE)
    w2 = None if w is None else w.reshape(rows, LANE)
    return p2, t2, w2, rows, numel


_COMPILER_PARAMS = pltpu.CompilerParams(
    dimension_semantics=("parallel",),
    vmem_limit_bytes=32 * 1024 * 1024,
)


def smooth_l1_sum_pallas(pred, target, weight=None, *, beta=1.0, tm=TM_DEFAULT):
    """Returns (total_sum_f32, numel) without materializing the loss map."""
    assert beta > 0
    p2, t2, w2, rows, numel = _prep(pred, target, weight)
    tm = min(tm, rows)
    nblk = pl.cdiv(rows, tm)
    has_weight = w2 is not None

    inputs = (p2, t2) + ((w2,) if has_weight else ())
    in_specs = [pl.BlockSpec((tm, LANE), lambda i: (i, 0)) for _ in inputs]

    kernel = functools.partial(
        _smooth_l1_sum_kernel,
        beta=float(beta), rows=rows, tm=tm, has_weight=has_weight)

    psums = pl.pallas_call(
        kernel,
        out_shape=jax.ShapeDtypeStruct((nblk, LANE), jnp.float32),
        grid_spec=pltpu.PrefetchScalarGridSpec(
            num_scalar_prefetch=0,
            grid=(nblk,),
            in_specs=in_specs,
            out_specs=pl.BlockSpec((1, LANE), lambda i: (i, 0)),
        ),
        compiler_params=_COMPILER_PARAMS,
    )(*inputs)

    return jnp.sum(psums), numel


def smooth_l1_elem_pallas(pred, target, weight=None, *, beta=1.0, tm=TM_DEFAULT):
    """Returns the elementwise (optionally weighted) smooth-L1 loss, pred.shape."""
    assert beta > 0
    p2, t2, w2, rows, numel = _prep(pred, target, weight)
    tm = min(tm, rows)
    nblk = pl.cdiv(rows, tm)
    has_weight = w2 is not None

    inputs = (p2, t2) + ((w2,) if has_weight else ())
    in_specs = [pl.BlockSpec((tm, LANE), lambda i: (i, 0)) for _ in inputs]

    kernel = functools.partial(
        _smooth_l1_elem_kernel, beta=float(beta), has_weight=has_weight)

    loss2d = pl.pallas_call(
        kernel,
        out_shape=jax.ShapeDtypeStruct((rows, LANE), pred.dtype),
        grid_spec=pltpu.PrefetchScalarGridSpec(
            num_scalar_prefetch=0,
            grid=(nblk,),
            in_specs=in_specs,
            out_specs=pl.BlockSpec((tm, LANE), lambda i: (i, 0)),
        ),
        compiler_params=_COMPILER_PARAMS,
    )(*inputs)

    return loss2d.reshape(-1)[:numel].reshape(pred.shape)


# ----------------------------------------------------------------------------
# module
# ----------------------------------------------------------------------------
class CustomSmoothL1Loss:
    """JAX/Pallas port of the PyTorch CustomSmoothL1Loss module (no params)."""

    def __init__(self, beta=1.0, reduction="mean", loss_weight=1.0):
        self.beta = beta
        self.reduction = reduction
        self.loss_weight = loss_weight

    def __call__(self, pred, target, weight=None, avg_factor=None,
                 reduction_override=None):
        reduction = reduction_override if reduction_override else self.reduction
        if target.size == 0:
            # matches the original torch.FloatTensor([0.0]) (shape (1,))
            return jnp.array([0.0], dtype=jnp.float32)

        if reduction == "none":
            # (with avg_factor, mmdet's weight_reduce_loss still returns the
            # elementwise loss for reduction='none')
            loss = smooth_l1_elem_pallas(pred, target, weight, beta=self.beta)
        elif reduction in ("mean", "sum"):
            total, numel = smooth_l1_sum_pallas(pred, target, weight,
                                                beta=self.beta)
            if avg_factor is None:
                loss = total / numel if reduction == "mean" else total
            else:
                if reduction == "mean":
                    loss = total / avg_factor
                else:
                    raise ValueError(
                        "avg_factor can not be used with reduction='sum'")
        else:
            raise ValueError(f"bad reduction {reduction}")

        return self.loss_weight * loss


# ----------------------------------------------------------------------------
# self-test
# ----------------------------------------------------------------------------
def _ref_elem(pred, target, beta=1.0):
    d = jnp.abs(pred.astype(jnp.float32) - target.astype(jnp.float32))
    return jnp.where(d < beta, 0.5 * d * d / beta, d - 0.5 * beta)


if __name__ == "__main__":
    key = jax.random.PRNGKey(0)
    k1, k2, k3, k4, k5 = jax.random.split(key, 5)

    # bbox-regression-like prediction map, NCHW
    pred = jax.random.normal(k1, (2, 4, 16, 16), dtype=jnp.float32)
    target = jax.random.normal(k2, (2, 4, 16, 16), dtype=jnp.float32)
    weight = jax.random.uniform(k3, (2, 4, 16, 16), dtype=jnp.float32)

    # 1) mean, unweighted
    m = CustomSmoothL1Loss(beta=1.0, reduction="mean", loss_weight=1.0)
    out = jax.block_until_ready(m(pred, target))
    ref = jnp.mean(_ref_elem(pred, target))
    assert jnp.allclose(out, ref, rtol=1e-5, atol=1e-5), (out, ref)

    # 2) sum, weighted, loss_weight=2
    m2 = CustomSmoothL1Loss(beta=1.0, reduction="sum", loss_weight=2.0)
    out2 = jax.block_until_ready(m2(pred, target, weight=weight))
    ref2 = 2.0 * jnp.sum(_ref_elem(pred, target) * weight)
    assert jnp.allclose(out2, ref2, rtol=1e-5, atol=1e-5), (out2, ref2)

    # 3) reduction='none', odd numel (exercises lane padding + slice-back)
    pr = jax.random.normal(k4, (3, 5, 7, 11), dtype=jnp.float32)
    tr = jax.random.normal(k5, (3, 5, 7, 11), dtype=jnp.float32)
    m3 = CustomSmoothL1Loss(beta=1.0, reduction="none", loss_weight=1.0)
    out3 = jax.block_until_ready(m3(pr, tr))
    ref3 = _ref_elem(pr, tr)
    assert out3.shape == pr.shape
    assert jnp.allclose(out3, ref3, rtol=1e-5, atol=1e-5)

    # 4) ragged grid path of the sum kernel (multi-block, masked tail rows)
    total, numel = smooth_l1_sum_pallas(pr, tr, beta=1.0, tm=8)
    total = jax.block_until_ready(total)
    assert jnp.allclose(total, jnp.sum(ref3), rtol=1e-5, atol=1e-5)

    # 5) bf16 inputs, mean with avg_factor
    pb, tb = pred.astype(jnp.bfloat16), target.astype(jnp.bfloat16)
    out5 = jax.block_until_ready(m(pb, tb, avg_factor=123.0))
    ref5 = jnp.sum(_ref_elem(pb, tb)) / 123.0
    assert jnp.allclose(out5, ref5, rtol=1e-3, atol=1e-3), (out5, ref5)

    print("KERNEL_OK")
</pallas_src>

<mosaic_0001>
module attributes {stable_mosaic.version = 11 : i64} {
  func.func @_smooth_l1_sum_kernel(%arg0: i32, %arg1: memref<16x128xf32, #tpu.memory_space<vmem>>, %arg2: memref<16x128xf32, #tpu.memory_space<vmem>>, %arg3: memref<1x128xf32, #tpu.memory_space<vmem>>) attributes {dimension_semantics = [#tpu.dimension_semantics<parallel>], iteration_bounds = array<i64: 1>, scalar_prefetch = 0 : i64, scratch_operands = 0 : i64, tpu.core_type = #tpu.core_type<tc>, window_params = [{transform_indices = @transform_0, window_bounds = array<i64: 16, 128>}, {transform_indices = @transform_1, window_bounds = array<i64: 16, 128>}, {transform_indices = @transform_2, window_bounds = array<i64: 1, 128>}]} {
    %c0 = arith.constant 0 : index
    %c0_0 = arith.constant 0 : index
    %0 = vector.load %arg1[%c0, %c0_0] : memref<16x128xf32, #tpu.memory_space<vmem>>, vector<16x128xf32>
    %c0_1 = arith.constant 0 : index
    %c0_2 = arith.constant 0 : index
    %1 = vector.load %arg2[%c0_1, %c0_2] : memref<16x128xf32, #tpu.memory_space<vmem>>, vector<16x128xf32>
    %2 = arith.subf %0, %1 : vector<16x128xf32>
    %3 = math.absf %2 : vector<16x128xf32>
    %cst = arith.constant 1.000000e+00 : f32
    %4 = vector.broadcast %cst : f32 to vector<16x128xf32>
    %5 = arith.cmpf olt, %3, %4 : vector<16x128xf32>
    %6 = arith.mulf %3, %3 : vector<16x128xf32>
    %cst_3 = arith.constant 5.000000e-01 : f32
    %7 = vector.broadcast %cst_3 : f32 to vector<16x128xf32>
    %8 = arith.mulf %6, %7 : vector<16x128xf32>
    %cst_4 = arith.constant 5.000000e-01 : f32
    %9 = vector.broadcast %cst_4 : f32 to vector<16x128xf32>
    %10 = arith.subf %3, %9 : vector<16x128xf32>
    %11 = arith.select %5, %8, %10 : vector<16x128xi1>, vector<16x128xf32>
    %cst_5 = arith.constant dense<0.000000e+00> : vector<128xf32>
    %12 = vector.multi_reduction <add>, %11, %cst_5 [0] : vector<16x128xf32> to vector<128xf32>
    %13 = vector.shape_cast %12 : vector<128xf32> to vector<1x128xf32>
    %c0_6 = arith.constant 0 : index
    %c0_7 = arith.constant 0 : index
    %14 = vector.load %arg3[%c0_6, %c0_7] : memref<1x128xf32, #tpu.memory_space<vmem>>, vector<1x128xf32>
    tpu.vector_store %arg3[%c0_6, %c0_7], %13 {strides = array<i32>} : memref<1x128xf32, #tpu.memory_space<vmem>>, vector<1x128xf32>,
    return
  }
  func.func @transform_0(%arg0: i32) -> (i32, i32) {
    %c0_i32 = arith.constant 0 : i32
    %c0_i32_0 = arith.constant 0 : i32
    return %arg0, %c0_i32 : i32, i32
  }
  func.func @transform_1(%arg0: i32) -> (i32, i32) {
    %c0_i32 = arith.constant 0 : i32
    %c0_i32_0 = arith.constant 0 : i32
    return %arg0, %c0_i32 : i32, i32
  }
  func.func @transform_2(%arg0: i32) -> (i32, i32) {
    %c0_i32 = arith.constant 0 : i32
    %c0_i32_0 = arith.constant 0 : i32
    return %arg0, %c0_i32 : i32, i32
  }
}

</mosaic_0001>

<llo_original>
// kernel: tpu_custom_call.1
$region0: #{tpu_custom_call.1}
  #allocation0 [shape = 'u32[]', space=smem, size = 0x4, offset = 0x4, fixed_abs, tag = 'smem constant byte address 0x4 - core index']
  #allocation1 [shape = 'u32[72,128]{1,0:T(1,128)}', space=vmem, size = 0x9000, scoped, tag = 'internal scratch']
  %s0 = inlined_call_operand.hbm [shape: f32[16,128], index: 0, kind: input, shape index: {}]
  %s1 = inlined_call_operand.hbm [shape: f32[16,128], index: 1, kind: input, shape index: {}]
  %s2 = inlined_call_operand.hbm [shape: f32[1,128], index: 2, kind: output, shape index: {}]
  %s3 = sld [smem:[#allocation0]]
  $region26: #{tpu_custom_call.1} parent=0
    _
  %s5 = ssub.s32 1, %s3
  %s6 = scalar_select 0, %s5, %s3
  $region1: #{tpu_custom_call.1} parent=0
    #allocation2 [shape = 'u8[8192]{0}', space=vmem, size = 0x2000, scoped, tag = 'input window, operand 0, single buffered']
    #allocation3 [shape = 's32[1]{0}', space=sflag, size = 0x4, scoped, tag = 'scoped memory for tpu_custom_call.1']
    #allocation4 [shape = 's32[1]{0}', space=sflag, size = 0x4, scoped, tag = 'scoped memory for tpu_custom_call.1']
    #allocation5 [shape = 'u8[8192]{0}', space=vmem, size = 0x2000, scoped, tag = 'input window, operand 1, single buffered']
    #allocation6 [shape = 's32[1]{0}', space=sflag, size = 0x4, scoped, tag = 'scoped memory for tpu_custom_call.1']
    #allocation7 [shape = 'u8[512]{0}', space=vmem, size = 0x400, scoped, tag = 'output window, operand 0, single buffered']
    %7 = vsyncpa [#allocation3], 0
    %8 = vsyncpa [#allocation6], 0
    %9 = vsyncpa [#allocation4], 0
    // Predicated region
    $region2: #{tpu_custom_call.1} parent=1 // pred_check
      _
    $region3: #{tpu_custom_call.1} parent=1 // pred_check_branch
      %11 = sbr.rel (0) target = $region5
    $region4: #{tpu_custom_call.1} parent=1 // pred_region
      %13 = vsyncadd [#allocation3], 0
      %s14 = sshll.u32 %s0, 4
      %s15 = int_to_ptr.hbm [resolvable:$true] %s14
      %s16 = sshll.u32 [#allocation2], 4
      %s17 = int_to_ptr.vmem [resolvable:$true] %s16
      %22 = dma.hbm_to_vmem [thread:$0]  %s15, 256, %s17, [#allocation3], 128, 128, 8
    $region5: #{tpu_custom_call.1} parent=1 // pred_fallthru
      _
    // Predicated region
    $region6: #{tpu_custom_call.1} parent=1 // pred_check
      _
    $region7: #{tpu_custom_call.1} parent=1 // pred_check_branch
      %24 = sbr.rel (0) target = $region9
    $region8: #{tpu_custom_call.1} parent=1 // pred_region
      %26 = vsyncadd [#allocation6], 0
      %s27 = sshll.u32 %s1, 4
      %s28 = int_to_ptr.hbm [resolvable:$true] %s27
      %s29 = sshll.u32 [#allocation5], 4
      %s30 = int_to_ptr.vmem [resolvable:$true] %s29
      %35 = dma.hbm_to_vmem [thread:$0]  %s28, 256, %s30, [#allocation6], 128, 128, 8
    $region9: #{tpu_custom_call.1} parent=1 // pred_fallthru
      _
    // Predicated region
    $region10: #{tpu_custom_call.1} parent=1 // pred_check
      _
    $region11: #{tpu_custom_call.1} parent=1 // pred_check_branch
      %37 = sbr.rel (0) target = $region13
    $region12: #{tpu_custom_call.1} parent=1 // pred_region
      %39 = dma.done [#allocation3], 256
    $region13: #{tpu_custom_call.1} parent=1 // pred_fallthru
      _
    // Predicated region
    $region14: #{tpu_custom_call.1} parent=1 // pred_check
      _
    $region15: #{tpu_custom_call.1} parent=1 // pred_check_branch
      %41 = sbr.rel (0) target = $region17
    $region16: #{tpu_custom_call.1} parent=1 // pred_region
      %43 = dma.done [#allocation6], 256
    $region17: #{tpu_custom_call.1} parent=1 // pred_fallthru
      _
    %v44 = vld [vmem:[#allocation2] sm:$0xff]
    %v45 = vld [vmem:[#allocation2 + $0x8] sm:$0xff]
    %v46 = vld [vmem:[#allocation5] sm:$0xff]
    %v47 = vld [vmem:[#allocation5 + $0x8] sm:$0xff]
    %v48 = vsub.f32 %v44, %v46
    %v49 = vsub.f32 %v45, %v47
    %v50 = vand.u32 2147483647, %v48
    %v51 = vand.u32 2147483647, %v49
    %vm52 = vcmp.lt.f32.partialorder %v50, 1.0
    %vm53 = vcmp.lt.f32.partialorder %v51, 1.0
    %v54 = vmul.f32 %v50, %v50
    %v55 = vmul.f32 %v51, %v51
    %v56 = vmul.f32 %v54, 0.5
    %v57 = vmul.f32 %v55, 0.5
    %v58 = vsub.f32 %v50, 0.5
    %v59 = vsub.f32 %v51, 0.5
    %v60 = vsel %vm52, %v56, %v58
    %v61 = vsel %vm53, %v57, %v59
    %v62 = vadd.f32 %v60, %v61
    %v63 = vrot.slane %v62, 4
    %v64 = vadd.f32 %v62, %v63
    %v65 = vrot.slane %v64, 2
    %v66 = vadd.f32 %v64, %v65
    %v67 = vrot.slane %v66, 1
    %v68 = vadd.f32 %v66, %v67
    %69 = vst [vmem:[#allocation7] sm:$0x1] %v68
    // Predicated region
    $region18: #{tpu_custom_call.1} parent=1 // pred_check
      _
    $region19: #{tpu_custom_call.1} parent=1 // pred_check_branch
      %71 = sbr.rel (0) target = $region21
    $region20: #{tpu_custom_call.1} parent=1 // pred_region
      %73 = vsyncadd [#allocation4], 0
      %s75 = sshll.u32 [#allocation7], 4
      %s76 = int_to_ptr.vmem [resolvable:$true] %s75
      %s77 = sshll.u32 %s2, 4
      %s78 = int_to_ptr.hbm [resolvable:$true] %s77
      %80 = dma.vmem_to_hbm [thread:$0]  %s76, 16, %s78, [#allocation4]
    $region21: #{tpu_custom_call.1} parent=1 // pred_fallthru
      _
    // Predicated region
    $region22: #{tpu_custom_call.1} parent=1 // pred_check
      _
    $region23: #{tpu_custom_call.1} parent=1 // pred_check_branch
      %82 = sbr.rel (0) target = $region25
    $region24: #{tpu_custom_call.1} parent=1 // pred_region
      %84 = dma.done [#allocation4], 16
    $region25: #{tpu_custom_call.1} parent=1 // pred_fallthru
      _
    %85 = vsyncpa [#allocation3], 1
    %86 = vsyncpa [#allocation6], 1
    %87 = vsyncpa [#allocation4], 1

</llo_original>
